<compile_context>
chip_gen: v5e
topology: v5e:2x2
jax: 0.10.0
libtpu: 0.0.40
codegen_flags: <defaults>
</compile_context>

<pallas_src>
import functools

import jax
import jax.numpy as jnp
from jax.experimental import pallas as pl
from jax.experimental.pallas import tpu as pltpu


def _round_up(x, m):
    return (x + m - 1) // m * m


def _ffn_kernel(x_ref, g_ref, beta_ref, w1_ref, b1_ref, w2_ref, b2_ref, o_ref, *, eps):
    # LayerNorm statistics in f32 (VPU); matmuls bf16 x bf16 -> f32 accumulate (MXU);
    # bias adds folded into the f32 accumulator before any downcast.
    x = x_ref[...].astype(jnp.float32)                        # (tile, D)

    mean = jnp.mean(x, axis=-1, keepdims=True)
    centered = x - mean
    var = jnp.mean(centered * centered, axis=-1, keepdims=True)
    xn = centered * jax.lax.rsqrt(var + eps)
    xn = xn * g_ref[...] + beta_ref[...]                      # gamma/beta already f32

    # w_1: (D -> H) on the native bf16 MXU path.
    h = jnp.dot(xn.astype(jnp.bfloat16), w1_ref[...],
                preferred_element_type=jnp.float32)
    h = h + b1_ref[...]                                       # f32 bias in accumulator
    h = h * jax.nn.sigmoid(h)                                 # SiLU (sigmoid on EUP)

    # dropout1: identity (eval mode)

    # w_2: (H -> D) on the MXU.
    y = jnp.dot(h.astype(jnp.bfloat16), w2_ref[...],
                preferred_element_type=jnp.float32)
    y = y + b2_ref[...]                                       # f32 bias in accumulator

    # dropout2: identity (eval mode)
    o_ref[...] = y.astype(o_ref.dtype)


def prepare_ffn_params(ln_gamma, ln_beta, w1, b1, w2, b2):
    """One-time parameter prep — call OUTSIDE the per-step hot path.

    PyTorch layout (out, in) is transposed to (in, out) and weights are cast to
    bf16 for the native MXU path; small affine/bias vectors stay f32 as (1, K).
    """
    return dict(
        gamma=jnp.asarray(ln_gamma, jnp.float32).reshape(1, -1),
        beta=jnp.asarray(ln_beta, jnp.float32).reshape(1, -1),
        w1_t=jnp.asarray(w1, jnp.float32).T.astype(jnp.bfloat16),   # (D, H)
        b1=jnp.asarray(b1, jnp.float32).reshape(1, -1),             # (1, H)
        w2_t=jnp.asarray(w2, jnp.float32).T.astype(jnp.bfloat16),   # (H, D)
        b2=jnp.asarray(b2, jnp.float32).reshape(1, -1),             # (1, D)
    )


def feed_forward_module(x, params, *, eps=1e-5, row_tile=512):
    """x: (batch, seq, D); params: output of prepare_ffn_params.

    row_tile: rows per grid step — sweep per chip (v5e: 128-256, v6e: 512-1024,
    v7x: 256-512 so the VMEM budget below stays well under ~48 MiB).
    """
    batch, seq, D = x.shape
    H = params["w1_t"].shape[1]
    N = batch * seq

    # Rows per grid step: large multiple of 8 (sublanes), clamped so tiny inputs
    # don't force a huge padded tile.
    tile = max(8, min(_round_up(row_tile, 8), _round_up(N, 8)))
    n_steps = pl.cdiv(N, tile)
    if n_steps > 1:
        n_steps = _round_up(n_steps, 2)   # even grid splits cleanly across v7x's 2 TCs
    n_pad = n_steps * tile

    x2d = x.reshape(N, D)
    if n_pad != N:
        # Zero rows are safe through LayerNorm (var=0 -> xn=0, no NaN) and discarded.
        x2d = jnp.pad(x2d, ((0, n_pad - N), (0, 0)))

    out_dtype = x.dtype
    itemsize_x = x2d.dtype.itemsize
    itemsize_o = jnp.dtype(out_dtype).itemsize

    # Explicit VMEM budget (conservative: weights counted double-buffered even
    # though their constant index_maps avoid refetch).
    weight_bytes = (D * H + H * D) * 2                    # bf16 resident weights
    vmem_need = (
        2 * tile * D * itemsize_x                         # x tile, double-buffered
        + 2 * tile * D * itemsize_o                       # out tile, double-buffered
        + 2 * weight_bytes                                # W1^T + W2^T
        + tile * H * 4                                    # f32 hidden activation h
        + 4 * tile * D * 4                                # f32 LayerNorm temporaries
        + 4 * (2 * D + H + D) * 4                         # gamma/beta/b1/b2
    )
    vmem_limit = int(min(max(int(vmem_need * 1.5) + (4 << 20), 32 << 20), 96 << 20))

    cost = pl.CostEstimate(
        flops=4 * n_pad * D * H,                          # two matmuls (2*N*D*H each)
        transcendentals=n_pad * H,                        # sigmoid in SiLU
        bytes_accessed=(n_pad * D * (itemsize_x + itemsize_o)
                        + weight_bytes + (2 * D + H + D) * 4),
    )

    # NOTE: for very large H (>= 8k, or tight v7x VMEM) add a reduction grid axis
    # over H (tile W1 output dim / W2 contraction dim, f32 scratch accumulator,
    # pl.when init/finalize, mark that axis "arbitrary"). Not needed at these sizes.
    out = pl.pallas_call(
        functools.partial(_ffn_kernel, eps=eps),
        out_shape=jax.ShapeDtypeStruct((n_pad, D), out_dtype),
        grid_spec=pltpu.PrefetchScalarGridSpec(
            num_scalar_prefetch=0,
            grid=(n_steps,),
            in_specs=[
                pl.BlockSpec((tile, D), lambda i: (i, 0)),   # x rows (pipelined)
                pl.BlockSpec((1, D), lambda i: (0, 0)),      # LN gamma (f32)
                pl.BlockSpec((1, D), lambda i: (0, 0)),      # LN beta  (f32)
                pl.BlockSpec((D, H), lambda i: (0, 0)),      # W1^T (bf16, resident)
                pl.BlockSpec((1, H), lambda i: (0, 0)),      # b1 (f32)
                pl.BlockSpec((H, D), lambda i: (0, 0)),      # W2^T (bf16, resident)
                pl.BlockSpec((1, D), lambda i: (0, 0)),      # b2 (f32)
            ],
            out_specs=pl.BlockSpec((tile, D), lambda i: (i, 0)),
        ),
        compiler_params=pltpu.CompilerParams(
            dimension_semantics=("parallel",),
            vmem_limit_bytes=vmem_limit,
        ),
        cost_estimate=cost,
    )(x2d, params["gamma"], params["beta"], params["w1_t"], params["b1"],
      params["w2_t"], params["b2"])

    return out[:N].reshape(batch, seq, D)


def _reference(x, ln_gamma, ln_beta, w1, b1, w2, b2, eps=1e-5):
    xf = x.astype(jnp.float32)
    mean = jnp.mean(xf, axis=-1, keepdims=True)
    var = jnp.mean((xf - mean) ** 2, axis=-1, keepdims=True)
    xn = (xf - mean) / jnp.sqrt(var + eps) * ln_gamma + ln_beta
    h = xn @ w1.T.astype(jnp.float32) + b1
    h = h * jax.nn.sigmoid(h)
    y = h @ w2.T.astype(jnp.float32) + b2
    return y.astype(x.dtype)


if __name__ == "__main__":
    # Small shapes consistent with the module: (batch, seq, input_feat)
    batch, seq, input_feat, hidden_units = 2, 8, 32, 64

    key = jax.random.PRNGKey(0)
    k_x, k_w1, k_b1, k_w2, k_b2, k_g, k_be = jax.random.split(key, 7)

    x = jax.random.normal(k_x, (batch, seq, input_feat), dtype=jnp.float32)

    # Deterministic parameter init (nn.Linear-style uniform bounds).
    lim1 = 1.0 / (input_feat ** 0.5)
    lim2 = 1.0 / (hidden_units ** 0.5)
    w1 = jax.random.uniform(k_w1, (hidden_units, input_feat), minval=-lim1, maxval=lim1)
    b1 = jax.random.uniform(k_b1, (hidden_units,), minval=-lim1, maxval=lim1)
    w2 = jax.random.uniform(k_w2, (input_feat, hidden_units), minval=-lim2, maxval=lim2)
    b2 = jax.random.uniform(k_b2, (input_feat,), minval=-lim2, maxval=lim2)
    ln_gamma = jnp.ones((input_feat,)) + 0.01 * jax.random.normal(k_g, (input_feat,))
    ln_beta = 0.01 * jax.random.normal(k_be, (input_feat,))

    params = prepare_ffn_params(ln_gamma, ln_beta, w1, b1, w2, b2)
    ref = _reference(x, ln_gamma, ln_beta, w1, b1, w2, b2)

    # Default (large-tile) path: tile clamps to the (tiny) row count here.
    out = feed_forward_module(x, params)
    out = jax.block_until_ready(out)
    assert out.shape == (batch, seq, input_feat)
    # bf16 MXU inputs with f32 accumulation => loosened tolerance vs the f32 reference.
    assert jnp.allclose(out, ref, atol=2e-2, rtol=2e-2)

    # Multi-step grid path (weights stay resident across steps via constant index_maps).
    out2 = feed_forward_module(x, params, row_tile=8)
    out2 = jax.block_until_ready(out2)
    assert jnp.allclose(out2, ref, atol=2e-2, rtol=2e-2)

    print("KERNEL_OK")
</pallas_src>

<mosaic_0001>
module attributes {stable_mosaic.version = 11 : i64} {
  func.func @_ffn_kernel(%arg0: i32, %arg1: memref<16x32xf32, #tpu.memory_space<vmem>>, %arg2: memref<1x32xf32, #tpu.memory_space<vmem>>, %arg3: memref<1x32xf32, #tpu.memory_space<vmem>>, %arg4: memref<32x64xbf16, #tpu.memory_space<vmem>>, %arg5: memref<1x64xf32, #tpu.memory_space<vmem>>, %arg6: memref<64x32xbf16, #tpu.memory_space<vmem>>, %arg7: memref<1x32xf32, #tpu.memory_space<vmem>>, %arg8: memref<16x32xf32, #tpu.memory_space<vmem>>) attributes {dimension_semantics = [#tpu.dimension_semantics<parallel>], iteration_bounds = array<i64: 1>, scalar_prefetch = 0 : i64, scratch_operands = 0 : i64, tpu.core_type = #tpu.core_type<tc>, window_params = [{transform_indices = @transform_0, window_bounds = array<i64: 16, 32>}, {pipeline_mode = #tpu.pipeline_mode<synchronous>, transform_indices = @transform_1, window_bounds = array<i64: 1, 32>}, {pipeline_mode = #tpu.pipeline_mode<synchronous>, transform_indices = @transform_2, window_bounds = array<i64: 1, 32>}, {pipeline_mode = #tpu.pipeline_mode<synchronous>, transform_indices = @transform_3, window_bounds = array<i64: 32, 64>}, {pipeline_mode = #tpu.pipeline_mode<synchronous>, transform_indices = @transform_4, window_bounds = array<i64: 1, 64>}, {pipeline_mode = #tpu.pipeline_mode<synchronous>, transform_indices = @transform_5, window_bounds = array<i64: 64, 32>}, {pipeline_mode = #tpu.pipeline_mode<synchronous>, transform_indices = @transform_6, window_bounds = array<i64: 1, 32>}, {transform_indices = @transform_7, window_bounds = array<i64: 16, 32>}]} {
    %c0 = arith.constant 0 : index
    %c0_0 = arith.constant 0 : index
    %0 = vector.load %arg1[%c0, %c0_0] : memref<16x32xf32, #tpu.memory_space<vmem>>, vector<16x32xf32>
    %cst = arith.constant dense<0.000000e+00> : vector<16xf32>
    %1 = vector.multi_reduction <add>, %0, %cst [1] : vector<16x32xf32> to vector<16xf32>
    %2 = vector.shape_cast %1 : vector<16xf32> to vector<16x1xf32>
    %cst_1 = arith.constant 3.200000e+01 : f32
    %3 = vector.broadcast %cst_1 : f32 to vector<16x1xf32>
    %4 = arith.divf %2, %3 : vector<16x1xf32>
    %5 = vector.broadcast %4 : vector<16x1xf32> to vector<16x32xf32>
    %6 = arith.subf %0, %5 : vector<16x32xf32>
    %7 = arith.mulf %6, %6 : vector<16x32xf32>
    %cst_2 = arith.constant dense<0.000000e+00> : vector<16xf32>
    %8 = vector.multi_reduction <add>, %7, %cst_2 [1] : vector<16x32xf32> to vector<16xf32>
    %9 = vector.shape_cast %8 : vector<16xf32> to vector<16x1xf32>
    %cst_3 = arith.constant 3.200000e+01 : f32
    %10 = vector.broadcast %cst_3 : f32 to vector<16x1xf32>
    %11 = arith.divf %9, %10 : vector<16x1xf32>
    %cst_4 = arith.constant 9.99999974E-6 : f32
    %12 = vector.broadcast %cst_4 : f32 to vector<16x1xf32>
    %13 = arith.addf %11, %12 : vector<16x1xf32>
    %14 = math.rsqrt %13 : vector<16x1xf32>
    %15 = vector.broadcast %14 : vector<16x1xf32> to vector<16x32xf32>
    %16 = arith.mulf %6, %15 : vector<16x32xf32>
    %c0_5 = arith.constant 0 : index
    %c0_6 = arith.constant 0 : index
    %17 = vector.load %arg2[%c0_5, %c0_6] : memref<1x32xf32, #tpu.memory_space<vmem>>, vector<1x32xf32>
    %18 = vector.broadcast %17 : vector<1x32xf32> to vector<16x32xf32>
    %19 = arith.mulf %16, %18 : vector<16x32xf32>
    %c0_7 = arith.constant 0 : index
    %c0_8 = arith.constant 0 : index
    %20 = vector.load %arg3[%c0_7, %c0_8] : memref<1x32xf32, #tpu.memory_space<vmem>>, vector<1x32xf32>
    %21 = vector.broadcast %20 : vector<1x32xf32> to vector<16x32xf32>
    %22 = arith.addf %19, %21 : vector<16x32xf32>
    %23 = arith.truncf %22 : vector<16x32xf32> to vector<16x32xbf16>
    %c0_9 = arith.constant 0 : index
    %c0_10 = arith.constant 0 : index
    %24 = vector.load %arg4[%c0_9, %c0_10] : memref<32x64xbf16, #tpu.memory_space<vmem>>, vector<32x64xbf16>
    %cst_11 = arith.constant dense<0.000000e+00> : vector<16x64xf32>
    %25 = tpu.matmul %23, %24, %cst_11 {dimension_numbers = #tpu.dot_dimension_numbers<[1], [0], [0], [1], [0, 0, 1, 1], [], []>} : vector<16x32xbf16>, vector<32x64xbf16>, vector<16x64xf32> -> vector<16x64xf32>
    %c0_12 = arith.constant 0 : index
    %c0_13 = arith.constant 0 : index
    %26 = vector.load %arg5[%c0_12, %c0_13] : memref<1x64xf32, #tpu.memory_space<vmem>>, vector<1x64xf32>
    %27 = vector.broadcast %26 : vector<1x64xf32> to vector<16x64xf32>
    %28 = arith.addf %25, %27 : vector<16x64xf32>
    %29 = arith.negf %28 : vector<16x64xf32>
    %30 = math.exp %29 : vector<16x64xf32>
    %cst_14 = arith.constant 1.000000e+00 : f32
    %31 = vector.broadcast %cst_14 : f32 to vector<16x64xf32>
    %32 = arith.addf %31, %30 : vector<16x64xf32>
    %33 = arith.divf %31, %32 : vector<16x64xf32>
    %34 = arith.mulf %28, %33 : vector<16x64xf32>
    %35 = arith.truncf %34 : vector<16x64xf32> to vector<16x64xbf16>
    %c0_15 = arith.constant 0 : index
    %c0_16 = arith.constant 0 : index
    %36 = vector.load %arg6[%c0_15, %c0_16] : memref<64x32xbf16, #tpu.memory_space<vmem>>, vector<64x32xbf16>
    %cst_17 = arith.constant dense<0.000000e+00> : vector<16x32xf32>
    %37 = tpu.matmul %35, %36, %cst_17 {dimension_numbers = #tpu.dot_dimension_numbers<[1], [0], [0], [1], [0, 0, 1, 1], [], []>} : vector<16x64xbf16>, vector<64x32xbf16>, vector<16x32xf32> -> vector<16x32xf32>
    %c0_18 = arith.constant 0 : index
    %c0_19 = arith.constant 0 : index
    %38 = vector.load %arg7[%c0_18, %c0_19] : memref<1x32xf32, #tpu.memory_space<vmem>>, vector<1x32xf32>
    %39 = vector.broadcast %38 : vector<1x32xf32> to vector<16x32xf32>
    %40 = arith.addf %37, %39 : vector<16x32xf32>
    %c0_20 = arith.constant 0 : index
    %c0_21 = arith.constant 0 : index
    %41 = vector.load %arg8[%c0_20, %c0_21] : memref<16x32xf32, #tpu.memory_space<vmem>>, vector<16x32xf32>
    tpu.vector_store %arg8[%c0_20, %c0_21], %40 {strides = array<i32>} : memref<16x32xf32, #tpu.memory_space<vmem>>, vector<16x32xf32>,
    return
  }
  func.func @transform_0(%arg0: i32) -> (i32, i32) {
    %c0_i32 = arith.constant 0 : i32
    %c0_i32_0 = arith.constant 0 : i32
    return %arg0, %c0_i32 : i32, i32
  }
  func.func @transform_1(%arg0: i32) -> (i32, i32) {
    %c0_i32 = arith.constant 0 : i32
    %c0_i32_0 = arith.constant 0 : i32
    %c0_i32_1 = arith.constant 0 : i32
    return %c0_i32, %c0_i32_0 : i32, i32
  }
  func.func @transform_2(%arg0: i32) -> (i32, i32) {
    %c0_i32 = arith.constant 0 : i32
    %c0_i32_0 = arith.constant 0 : i32
    %c0_i32_1 = arith.constant 0 : i32
    return %c0_i32, %c0_i32_0 : i32, i32
  }
  func.func @transform_3(%arg0: i32) -> (i32, i32) {
    %c0_i32 = arith.constant 0 : i32
    %c0_i32_0 = arith.constant 0 : i32
    %c0_i32_1 = arith.constant 0 : i32
    return %c0_i32, %c0_i32_0 : i32, i32
  }
  func.func @transform_4(%arg0: i32) -> (i32, i32) {
    %c0_i32 = arith.constant 0 : i32
    %c0_i32_0 = arith.constant 0 : i32
    %c0_i32_1 = arith.constant 0 : i32
    return %c0_i32, %c0_i32_0 : i32, i32
  }
  func.func @transform_5(%arg0: i32) -> (i32, i32) {
    %c0_i32 = arith.constant 0 : i32
    %c0_i32_0 = arith.constant 0 : i32
    %c0_i32_1 = arith.constant 0 : i32
    return %c0_i32, %c0_i32_0 : i32, i32
  }
  func.func @transform_6(%arg0: i32) -> (i32, i32) {
    %c0_i32 = arith.constant 0 : i32
    %c0_i32_0 = arith.constant 0 : i32
    %c0_i32_1 = arith.constant 0 : i32
    return %c0_i32, %c0_i32_0 : i32, i32
  }
  func.func @transform_7(%arg0: i32) -> (i32, i32) {
    %c0_i32 = arith.constant 0 : i32
    %c0_i32_0 = arith.constant 0 : i32
    return %arg0, %c0_i32 : i32, i32
  }
}

</mosaic_0001>

<llo_original>
// kernel: tpu_custom_call.1
$region0: #{tpu_custom_call.1}
  #allocation0 [shape = 'u32[]', space=smem, size = 0x4, offset = 0x4, fixed_abs, tag = 'smem constant byte address 0x4 - core index']
  #allocation1 [shape = 'u32[72,128]{1,0:T(1,128)}', space=vmem, size = 0x9000, scoped, tag = 'internal scratch']
  %s0 = inlined_call_operand.vmem [shape: f32[16,32], index: 0, kind: input, shape index: {}]
  %s1 = inlined_call_operand.vmem [shape: f32[1,32], index: 1, kind: input, shape index: {}]
  %s2 = inlined_call_operand.vmem [shape: f32[1,32], index: 2, kind: input, shape index: {}]
  %s3 = inlined_call_operand.vmem [shape: bf16[32,64], index: 3, kind: input, shape index: {}]
  %s4 = inlined_call_operand.vmem [shape: f32[1,64], index: 4, kind: input, shape index: {}]
  %s5 = inlined_call_operand.vmem [shape: bf16[64,32], index: 5, kind: input, shape index: {}]
  %s6 = inlined_call_operand.vmem [shape: f32[1,32], index: 6, kind: input, shape index: {}]
  %s7 = inlined_call_operand.hbm [shape: f32[16,32], index: 7, kind: output, shape index: {}]
  %s8 = sld [smem:[#allocation0]]
  $region38: #{tpu_custom_call.1} parent=0
    _
  %s10 = ssub.s32 1, %s8
  %s11 = scalar_select 0, %s10, %s8
  $region1: #{tpu_custom_call.1} parent=0
    #allocation2 [shape = 'u8[8192]{0}', space=vmem, size = 0x2000, scoped, tag = 'output window, operand 0, single buffered']
    #allocation3 [shape = 's32[1]{0}', space=sflag, size = 0x4, scoped, tag = 'scoped memory for tpu_custom_call.1']
    %12 = vsyncpa [#allocation3], 0
    // Predicated region
    $region2: #{tpu_custom_call.1} parent=1 // pred_check
      _
    $region3: #{tpu_custom_call.1} parent=1 // pred_check_branch
      %14 = sbr.rel (0) target = $region5
    $region4: #{tpu_custom_call.1} parent=1 // pred_region
      _
    $region5: #{tpu_custom_call.1} parent=1 // pred_fallthru
      _
    // Predicated region
    $region6: #{tpu_custom_call.1} parent=1 // pred_check
      _
    $region7: #{tpu_custom_call.1} parent=1 // pred_check_branch
      %16 = sbr.rel (0) target = $region9
    $region8: #{tpu_custom_call.1} parent=1 // pred_region
      _
    $region9: #{tpu_custom_call.1} parent=1 // pred_fallthru
      _
    // Predicated region
    $region10: #{tpu_custom_call.1} parent=1 // pred_check
      _
    $region11: #{tpu_custom_call.1} parent=1 // pred_check_branch
      %18 = sbr.rel (0) target = $region13
    $region12: #{tpu_custom_call.1} parent=1 // pred_region
      _
    $region13: #{tpu_custom_call.1} parent=1 // pred_fallthru
      _
    // Predicated region
    $region14: #{tpu_custom_call.1} parent=1 // pred_check
      _
    $region15: #{tpu_custom_call.1} parent=1 // pred_check_branch
      %20 = sbr.rel (0) target = $region17
    $region16: #{tpu_custom_call.1} parent=1 // pred_region
      _
    $region17: #{tpu_custom_call.1} parent=1 // pred_fallthru
      _
    // Predicated region
    $region18: #{tpu_custom_call.1} parent=1 // pred_check
      _
    $region19: #{tpu_custom_call.1} parent=1 // pred_check_branch
      %22 = sbr.rel (0) target = $region21
    $region20: #{tpu_custom_call.1} parent=1 // pred_region
      _
    $region21: #{tpu_custom_call.1} parent=1 // pred_fallthru
      _
    // Predicated region
    $region22: #{tpu_custom_call.1} parent=1 // pred_check
      _
    $region23: #{tpu_custom_call.1} parent=1 // pred_check_branch
      %24 = sbr.rel (0) target = $region25
    $region24: #{tpu_custom_call.1} parent=1 // pred_region
      _
    $region25: #{tpu_custom_call.1} parent=1 // pred_fallthru
      _
    // Predicated region
    $region26: #{tpu_custom_call.1} parent=1 // pred_check
      _
    $region27: #{tpu_custom_call.1} parent=1 // pred_check_branch
      %26 = sbr.rel (0) target = $region29
    $region28: #{tpu_custom_call.1} parent=1 // pred_region
      _
    $region29: #{tpu_custom_call.1} parent=1 // pred_fallthru
      _
    %v28 = vld [vmem:[%s0] sm:$0xff]
    %v29 = vld [vmem:[%s0 + $0x8] sm:$0xff]
    %vm30 = vcmask 261120
    %v31 = vsel %vm30, %v28, 0.0
    %32 = vadd.xlane.f32.xlu0 %v31
    %v33 = vpop.xlane.xlu0 %32
    %v34 = vsel %vm30, %v29, 0.0
    %35 = vadd.xlane.f32.xlu0 %v34
    %v36 = vpop.xlane.xlu0 %35
    %v37 = vrcp.pop 32.0
    %v38 = vmul.f32 32.0, %v37
    %v39 = vsub.f32 1.0, %v38
    %v40 = vmul.f32 %v37, %v39
    %v41 = vadd.f32 %v37, %v40
    %vm42 = vweird.f32 %v37
    %v43 = vsel %vm42, %v37, %v41
    %v44 = vmul.f32 %v33, %v43
    %v45 = vmul.f32 %v36, %v43
    %v46 = vsub.f32 %v28, %v44
    %v47 = vsub.f32 %v29, %v45
    %v48 = vmul.f32 %v46, %v46
    %v49 = vmul.f32 %v47, %v47
    %v50 = vsel %vm30, %v48, 0.0
    %51 = vadd.xlane.f32.xlu0 %v50
    %v52 = vpop.xlane.xlu0 %51
    %v53 = vsel %vm30, %v49, 0.0
    %54 = vadd.xlane.f32.xlu0 %v53
    %v55 = vpop.xlane.xlu0 %54
    %v56 = vmul.f32 %v52, %v43
    %v57 = vmul.f32 %v55, %v43
    %v58 = vadd.f32 %v56, 1e-05
    %v59 = vadd.f32 %v57, 1e-05
    %v60 = vrsqrt.pop %v58
    %v61 = vmul.f32 %v60, %v58
    %v62 = vmul.f32 %v61, %v60
    %v63 = vmul.f32 0.5, %v62
    %v64 = vsub.f32 1.5, %v63
    %v65 = vmul.f32 %v60, %v64
    %vm66 = vweird.f32 %v58
    %vm67 = vweird.f32 %v60
    %vm68 = vmor %vm66, %vm67
    %v69 = vsel %vm68, %v60, %v65
    %v70 = vrsqrt.pop %v59
    %v71 = vmul.f32 %v70, %v59
    %v72 = vmul.f32 %v71, %v70
    %v73 = vmul.f32 0.5, %v72
    %v74 = vsub.f32 1.5, %v73
    %v75 = vmul.f32 %v70, %v74
    %vm76 = vweird.f32 %v59
    %vm77 = vweird.f32 %v70
    %vm78 = vmor %vm76, %vm77
    %v79 = vsel %vm78, %v70, %v75
    %v80 = vmul.f32 %v46, %v69
    %v81 = vmul.f32 %v47, %v79
    %v82 = vld [vmem:[%s1] sm:$0x1]
    %v84 = vperm.slane %v82, 0
    %v86 = vmul.f32 %v80, %v84
    %v87 = vmul.f32 %v81, %v84
    %v88 = vld [vmem:[%s2] sm:$0x1]
    %v90 = vperm.slane %v88, 0
    %v92 = vadd.f32 %v86, %v90
    %v93 = vadd.f32 %v87, %v90
    %v94 = vpack.c.bf16 %v93, %v92
    %v95 = vld [vmem:[%s3] sm:$0xf]
    %v96 = vld [vmem:[%s3 + $0x4] sm:$0xf]
    %v97 = vld [vmem:[%s3 + $0x8] sm:$0xf]
    %v98 = vld [vmem:[%s3 + $0xc] sm:$0xf]
    %v99 = vld [vmem:[%s4] sm:$0x1]
    %v101 = vperm.slane %v99, 0
    %v107 = vunpack.c.l.b16 %v95
    %v108 = vunpack.c.l.b16 %v96
    %v109 = vunpack.c.l.b16 %v97
    %v110 = vunpack.c.l.b16 %v98
    %v111 = vpack.c.b16 %v108, %v107
    %v112 = vpack.c.b16 %v110, %v109
    %v116 = vsel %vm30, %v94, 0
    %118 = vmatpush.bf16.msra.mxu0 0
    %119 = vmatpush.bf16.msra.mxu0 0
    %120 = vmatpush.bf16.msra.mxu0 0
    %121 = vmatpush.bf16.msra.mxu0 0
    %122 = vmatpush.bf16.msra.mxu0 0
    %123 = vmatpush.bf16.msra.mxu0 0
    %124 = vmatpush.bf16.msra.mxu0 %v112
    %125 = vmatpush.bf16.msra.mxu0 %v111
    %126 = vmatmul.bf16.gmra.mxu0 %v116
    %v127 = vpop.f32.mrf.mxu0
    %v128 = vadd.f32 %v101, %v127
    %v129 = vpop.f32.mrf.mxu0
    %v130 = vadd.f32 %v101, %v129
    %131 = vdwg.mxu0
    %v132 = vxor.u32 %v128, 2147483648
    %v133 = vxor.u32 %v130, 2147483648
    %v134 = vmul.f32 %v132, 1.442695
    %v135 = vpow.pop %v134
    %v136 = vmul.f32 %v133, 1.442695
    %v137 = vpow.pop %v136
    %v138 = vadd.f32 %v135, 1.0
    %v139 = vadd.f32 %v137, 1.0
    %v140 = vrcp.pop %v138
    %v141 = vmul.f32 %v138, %v140
    %v142 = vsub.f32 1.0, %v141
    %v143 = vmul.f32 %v140, %v142
    %v144 = vadd.f32 %v140, %v143
    %vm145 = vweird.f32 %v138
    %vm146 = vweird.f32 %v140
    %vm147 = vmor %vm145, %vm146
    %v148 = vsel %vm147, %v140, %v144
    %v149 = vand.u32 2147483647, %v138
    %vm150 = vcmp.eq.f32.partialorder %v149, 8.507059e+37
    %v151 = vand.u32 %v138, 2147483648
    %v152 = vor.u32 1.1754944e-38, %v151
    %v153 = vsel %vm150, %v152, %v148
    %v154 = vmul.f32 1.0, %v153
    %v155 = vrcp.pop %v139
    %v156 = vmul.f32 %v139, %v155
    %v157 = vsub.f32 1.0, %v156
    %v158 = vmul.f32 %v155, %v157
    %v159 = vadd.f32 %v155, %v158
    %vm160 = vweird.f32 %v139
    %vm161 = vweird.f32 %v155
    %vm162 = vmor %vm160, %vm161
    %v163 = vsel %vm162, %v155, %v159
    %v164 = vand.u32 2147483647, %v139
    %vm165 = vcmp.eq.f32.partialorder %v164, 8.507059e+37
    %v166 = vand.u32 %v139, 2147483648
    %v167 = vor.u32 1.1754944e-38, %v166
    %v168 = vsel %vm165, %v167, %v163
    %v169 = vmul.f32 1.0, %v168
    %v170 = vmul.f32 %v128, %v154
    %v171 = vmul.f32 %v130, %v169
    %v172 = vpack.c.bf16 %v171, %v170
    %v173 = vld [vmem:[%s5] sm:$0xf]
    %v174 = vld [vmem:[%s5 + $0x4] sm:$0xf]
    %v175 = vld [vmem:[%s5 + $0x8] sm:$0xf]
    %v176 = vld [vmem:[%s5 + $0xc] sm:$0xf]
    %v177 = vld [vmem:[%s5 + $0x10] sm:$0xf]
    %v178 = vld [vmem:[%s5 + $0x14] sm:$0xf]
    %v179 = vld [vmem:[%s5 + $0x18] sm:$0xf]
    %v180 = vld [vmem:[%s5 + $0x1c] sm:$0xf]
    %v181 = vld [vmem:[%s6] sm:$0x1]
    %v183 = vperm.slane %v181, 0
    %v193 = vunpack.c.l.b16 %v173
    %v194 = vunpack.c.l.b16 %v174
    %v195 = vunpack.c.l.b16 %v175
    %v196 = vunpack.c.l.b16 %v176
    %v197 = vunpack.c.l.b16 %v177
    %v198 = vunpack.c.l.b16 %v178
    %v199 = vunpack.c.l.b16 %v179
    %v200 = vunpack.c.l.b16 %v180
    %v201 = vpack.c.b16 %v194, %v193
    %v202 = vpack.c.b16 %v196, %v195
    %v203 = vpack.c.b16 %v198, %v197
    %v204 = vpack.c.b16 %v200, %v199
    %vm209 = vcmask 523264
    %v211 = vsel %vm209, %v172, 0
    %213 = vmatpush.bf16.msra.mxu0 0
    %214 = vmatpush.bf16.msra.mxu0 0
    %215 = vmatpush.bf16.msra.mxu0 0
    %216 = vmatpush.bf16.msra.mxu0 0
    %217 = vmatpush.bf16.msra.mxu0 %v204
    %218 = vmatpush.bf16.msra.mxu0 %v203
    %219 = vmatpush.bf16.msra.mxu0 %v202
    %220 = vmatpush.bf16.msra.mxu0 %v201
    %221 = vmatmul.bf16.gmra.mxu0 %v211
    %v222 = vpop.f32.mrf.mxu0
    %v223 = vadd.f32 %v183, %v222
    %v224 = vpop.f32.mrf.mxu0
    %v225 = vadd.f32 %v183, %v224
    %226 = vdwg.mxu0
    %227 = vst.msk [vmem:[#allocation2] sm:$0xff] %vm30, %v223
    %228 = vst.msk [vmem:[#allocation2 + $0x8] sm:$0xff] %vm30, %v225
    // Predicated region
    $region30: #{tpu_custom_call.1} parent=1 // pred_check
      _
    $region31: #{tpu_custom_call.1} parent=1 // pred_check_branch
      %230 = sbr.rel (0) target = $region33
    $region32: #{tpu_custom_call.1} parent=1 // pred_region
      %232 = vsyncadd [#allocation3], 0
      %s233 = sshll.u32 [#allocation2], 4
      %s234 = int_to_ptr.vmem [resolvable:$true] %s233
      %s235 = sshll.u32 %s7, 4
      %s236 = int_to_ptr.hbm [resolvable:$true] %s235
      %241 = dma.vmem_to_hbm [thread:$0]  %s234, 256, %s236, [#allocation3], 128, 128, 8
    $region33: #{tpu_custom_call.1} parent=1 // pred_fallthru
      _
    // Predicated region
    $region34: #{tpu_custom_call.1} parent=1 // pred_check
      _
    $region35: #{tpu_custom_call.1} parent=1 // pred_check_branch
      %243 = sbr.rel (0) target = $region37
    $region36: #{tpu_custom_call.1} parent=1 // pred_region
      %245 = dma.done [#allocation3], 256
    $region37: #{tpu_custom_call.1} parent=1 // pred_fallthru
      _
    %246 = vsyncpa [#allocation3], 1

</llo_original>
